<compile_context>
chip_gen: v5e
topology: v5e:2x2
jax: 0.10.0
libtpu: 0.0.40
codegen_flags: <defaults>
</compile_context>

<pallas_src>
import jax
import jax.numpy as jnp
from jax import lax
from jax.experimental import pallas as pl
from jax.experimental.pallas import tpu as pltpu

IN_DIM, H1_DIM, H2_DIM, OUT_DIM = 3, 32, 16, 1

_CHUNK = 512            # lane sub-chunk: h1 (32,512)=16 vregs, h2 (16,512)=8 vregs
_MAX_TB = 16384         # batch-tile cap (lanes); ~2 MiB VMEM/tile incl. double-buffering
_SPLIT_THRESHOLD = 8192  # force >=2 grid steps above 2x this (v7x: feed both TCs)


def _mlp_kernel(xT_ref, w1_ref, b1_ref, w2_ref, b2_ref, w3t_ref, b3_ref, o_ref):
    # Weights / biases are pinned in VMEM (constant index_map); load once per tile.
    w1 = w1_ref[...]          # (32, 3)
    b1 = b1_ref[...]          # (32, 1)
    w2 = w2_ref[...]          # (16, 32)
    b2 = b2_ref[...]          # (16, 1)
    w3t = w3t_ref[...]        # (16, 1)
    b3 = b3_ref[...]          # (1, 1)

    tb = xT_ref.shape[1]
    n_chunks = tb // _CHUNK   # static: tb is always a multiple of _CHUNK

    def body(c, carry):
        j = pl.multiple_of(c * _CHUNK, _CHUNK)
        xT = xT_ref[:, pl.ds(j, _CHUNK)]                           # (3, CHUNK)

        # Layer 1: Linear(3, 32) + ReLU, computed transposed (h = W @ x^T + b).
        h1 = jnp.dot(w1, xT, preferred_element_type=jnp.float32)
        h1 = jnp.maximum(h1 + b1, 0.0)                             # (32, CHUNK)

        # Layer 2: Linear(32, 16) + ReLU.
        h2 = jnp.dot(w2, h1, preferred_element_type=jnp.float32)
        h2 = jnp.maximum(h2 + b2, 0.0)                             # (16, CHUNK)

        # Layer 3: Linear(16, 1) as VPU multiply + sublane reduce (K=16, N=1 is
        # not worth a third MXU push/drain), then Sigmoid on the EUP.
        h3 = jnp.sum(w3t * h2, axis=0, keepdims=True)              # (1, CHUNK)
        o_ref[:, pl.ds(j, _CHUNK)] = jax.nn.sigmoid(h3 + b3)
        return carry

    # Unroll short chunk loops (LLO scheduler visibility); keep long tiles rolled
    # so code size stays bounded.
    lax.fori_loop(0, n_chunks, body, 0, unroll=(n_chunks <= 8))


def _round_up(n, m):
    return ((n + m - 1) // m) * m


def _plan(n):
    """Pick (n_tiles, tb, n_pad) for a lane count n (multiple of _CHUNK)."""
    n_tiles = max(1, pl.cdiv(n, _MAX_TB))
    if n >= 2 * _SPLIT_THRESHOLD:
        n_tiles = max(n_tiles, 2)          # v7x: keep both TensorCores busy
    tb = pl.cdiv(n, n_tiles * _CHUNK) * _CHUNK
    return n_tiles, tb, n_tiles * tb       # waste < n_tiles * _CHUNK lanes


def _run_pallas(xT_padded, params, n_tiles, tb):
    """xT_padded: (3, n_tiles*tb) f32, lane-major. Returns (1, n_tiles*tb) f32."""
    w1, b1, w2, b2, w3, b3 = params
    n_pad = n_tiles * tb

    b1c = b1.reshape(H1_DIM, 1)
    b2c = b2.reshape(H2_DIM, 1)
    b3c = b3.reshape(OUT_DIM, 1)
    w3t = w3.reshape(OUT_DIM, H2_DIM).T                            # (16, 1)

    # Constant block index -> fetched once, VMEM-resident across grid steps.
    pinned = lambda shape: pl.BlockSpec(shape, lambda i: (0, 0))

    flops = 2 * n_pad * (IN_DIM * H1_DIM + H1_DIM * H2_DIM + H2_DIM * OUT_DIM)
    bytes_accessed = 4 * (
        n_pad * (IN_DIM + OUT_DIM)
        + w1.size + b1.size + w2.size + b2.size + w3.size + b3.size
    )

    return pl.pallas_call(
        _mlp_kernel,
        out_shape=jax.ShapeDtypeStruct((OUT_DIM, n_pad), jnp.float32),
        grid=(n_tiles,),
        in_specs=[
            pl.BlockSpec((IN_DIM, tb), lambda i: (0, i)),   # streamed x^T tile
            pinned(w1.shape), pinned(b1c.shape),
            pinned(w2.shape), pinned(b2c.shape),
            pinned(w3t.shape), pinned(b3c.shape),
        ],
        out_specs=pl.BlockSpec((OUT_DIM, tb), lambda i: (0, i)),
        compiler_params=pltpu.CompilerParams(
            dimension_semantics=("parallel",),        # megacore sharding on v7x
            vmem_limit_bytes=32 * 1024 * 1024,        # v5e default is only 16 MiB
        ),
        cost_estimate=pl.CostEstimate(
            flops=flops, transcendentals=n_pad, bytes_accessed=bytes_accessed),
    )(xT_padded, w1, b1c, w2, b2c, w3t, b3c)


def mlp_forward_lane_major(xT, params):
    """Hot path. xT: (3, N) f32, batch on the lane axis, N a multiple of 512.
    Returns (1, N) f32.  No layout copies beyond (at most) a tiny tail pad."""
    n = xT.shape[1]
    assert n % _CHUNK == 0, "lane count must be a multiple of 512"
    n_tiles, tb, n_pad = _plan(n)
    if n_pad != n:
        xT = jnp.pad(xT, ((0, 0), (0, n_pad - n)))
    out = _run_pallas(xT, params, n_tiles, tb)
    return out[:, :n]


def mlp_forward(x, params):
    """Torch-contract wrapper: x (B, 3) f32 -> (B, 1) f32.
    Does a single fused pad+transpose copy in and a slice+transpose out; for
    bandwidth-critical use keep data lane-major and call mlp_forward_lane_major."""
    B = x.shape[0]
    n = _round_up(max(B, _CHUNK), _CHUNK)
    n_tiles, tb, n_pad = _plan(n)
    xT = jnp.zeros((IN_DIM, n_pad), jnp.float32).at[:, :B].set(x.T)
    out = _run_pallas(xT, params, n_tiles, tb)                     # (1, n_pad)
    return out[:, :B].T                                            # (B, 1)


def init_params(key):
    """Torch-style init: w ~ U(+-1/sqrt(fan_in)), shape (out, in); b shape (out,)."""
    dims = [(IN_DIM, H1_DIM), (H1_DIM, H2_DIM), (H2_DIM, OUT_DIM)]
    params = []
    for fan_in, fan_out in dims:
        key, kw, kb = jax.random.split(key, 3)
        bound = 1.0 / jnp.sqrt(float(fan_in))
        w = jax.random.uniform(kw, (fan_out, fan_in), jnp.float32, -bound, bound)
        b = jax.random.uniform(kb, (fan_out,), jnp.float32, -bound, bound)
        params += [w, b]
    return tuple(params)


def mlp_reference(x, params):
    w1, b1, w2, b2, w3, b3 = params
    h = jnp.maximum(x @ w1.T + b1, 0.0)
    h = jnp.maximum(h @ w2.T + b2, 0.0)
    return jax.nn.sigmoid(h @ w3.T + b3)


if __name__ == "__main__":
    key = jax.random.PRNGKey(0)
    key, kp = jax.random.split(key)
    params = init_params(kp)

    # Small primary check (batch=8: one tile, one chunk) plus two shapes that
    # exercise the unrolled-chunk and multi-tile / rolled-loop paths.
    for batch in (8, 2000, 20000):
        key, kx = jax.random.split(key)
        x = jax.random.normal(kx, (batch, IN_DIM), jnp.float32)

        out = mlp_forward(x, params)
        jax.block_until_ready(out)

        ref = mlp_reference(x, params)
        assert out.shape == (batch, 1)
        assert jnp.allclose(out, ref, atol=1e-5, rtol=1e-5), f"mismatch at B={batch}"

    print("KERNEL_OK")
</pallas_src>

<mosaic_0001>
module attributes {stable_mosaic.version = 11 : i64} {
  func.func @_mlp_kernel(%arg0: i32, %arg1: memref<3x512xf32, #tpu.memory_space<vmem>>, %arg2: memref<32x3xf32, #tpu.memory_space<vmem>>, %arg3: memref<32x1xf32, #tpu.memory_space<vmem>>, %arg4: memref<16x32xf32, #tpu.memory_space<vmem>>, %arg5: memref<16x1xf32, #tpu.memory_space<vmem>>, %arg6: memref<16x1xf32, #tpu.memory_space<vmem>>, %arg7: memref<1x1xf32, #tpu.memory_space<vmem>>, %arg8: memref<1x512xf32, #tpu.memory_space<vmem>>) attributes {dimension_semantics = [#tpu.dimension_semantics<parallel>], iteration_bounds = array<i64: 1>, scalar_prefetch = 0 : i64, scratch_operands = 0 : i64, tpu.core_type = #tpu.core_type<tc>, window_params = [{transform_indices = @transform_0, window_bounds = array<i64: 3, 512>}, {pipeline_mode = #tpu.pipeline_mode<synchronous>, transform_indices = @transform_1, window_bounds = array<i64: 32, 3>}, {pipeline_mode = #tpu.pipeline_mode<synchronous>, transform_indices = @transform_2, window_bounds = array<i64: 32, 1>}, {pipeline_mode = #tpu.pipeline_mode<synchronous>, transform_indices = @transform_3, window_bounds = array<i64: 16, 32>}, {pipeline_mode = #tpu.pipeline_mode<synchronous>, transform_indices = @transform_4, window_bounds = array<i64: 16, 1>}, {pipeline_mode = #tpu.pipeline_mode<synchronous>, transform_indices = @transform_5, window_bounds = array<i64: 16, 1>}, {pipeline_mode = #tpu.pipeline_mode<synchronous>, transform_indices = @transform_6, window_bounds = array<i64: 1, 1>}, {transform_indices = @transform_7, window_bounds = array<i64: 1, 512>}]} {
    %c0 = arith.constant 0 : index
    %c0_0 = arith.constant 0 : index
    %0 = vector.load %arg2[%c0, %c0_0] : memref<32x3xf32, #tpu.memory_space<vmem>>, vector<32x3xf32>
    %c0_1 = arith.constant 0 : index
    %c0_2 = arith.constant 0 : index
    %1 = vector.load %arg3[%c0_1, %c0_2] : memref<32x1xf32, #tpu.memory_space<vmem>>, vector<32x1xf32>
    %c0_3 = arith.constant 0 : index
    %c0_4 = arith.constant 0 : index
    %2 = vector.load %arg4[%c0_3, %c0_4] : memref<16x32xf32, #tpu.memory_space<vmem>>, vector<16x32xf32>
    %c0_5 = arith.constant 0 : index
    %c0_6 = arith.constant 0 : index
    %3 = vector.load %arg5[%c0_5, %c0_6] : memref<16x1xf32, #tpu.memory_space<vmem>>, vector<16x1xf32>
    %c0_7 = arith.constant 0 : index
    %c0_8 = arith.constant 0 : index
    %4 = vector.load %arg6[%c0_7, %c0_8] : memref<16x1xf32, #tpu.memory_space<vmem>>, vector<16x1xf32>
    %c0_9 = arith.constant 0 : index
    %c0_10 = arith.constant 0 : index
    %5 = vector.load %arg7[%c0_9, %c0_10] : memref<1x1xf32, #tpu.memory_space<vmem>>, vector<1x1xf32>
    %c0_i32 = arith.constant 0 : i32
    %c512_i32 = arith.constant 512 : i32
    %6 = arith.muli %c0_i32, %c512_i32 : i32
    %7 = tpu.assume_multiple %6, 512 : i32
    %c0_11 = arith.constant 0 : index
    %8 = arith.index_cast %7 : i32 to index
    %9 = vector.load %arg1[%c0_11, %8] : memref<3x512xf32, #tpu.memory_space<vmem>>, vector<3x512xf32>
    %cst = arith.constant dense<0.000000e+00> : vector<32x512xf32>
    %10 = tpu.matmul %0, %9, %cst {dimension_numbers = #tpu.dot_dimension_numbers<[1], [0], [0], [1], [0, 0, 1, 1], [], []>} : vector<32x3xf32>, vector<3x512xf32>, vector<32x512xf32> -> vector<32x512xf32>
    %11 = vector.broadcast %1 : vector<32x1xf32> to vector<32x512xf32>
    %12 = arith.addf %10, %11 : vector<32x512xf32>
    %cst_12 = arith.constant 0.000000e+00 : f32
    %13 = vector.broadcast %cst_12 : f32 to vector<32x512xf32>
    %14 = arith.maximumf %12, %13 : vector<32x512xf32>
    %cst_13 = arith.constant dense<0.000000e+00> : vector<16x512xf32>
    %15 = tpu.matmul %2, %14, %cst_13 {dimension_numbers = #tpu.dot_dimension_numbers<[1], [0], [0], [1], [0, 0, 1, 1], [], []>} : vector<16x32xf32>, vector<32x512xf32>, vector<16x512xf32> -> vector<16x512xf32>
    %16 = vector.broadcast %3 : vector<16x1xf32> to vector<16x512xf32>
    %17 = arith.addf %15, %16 : vector<16x512xf32>
    %cst_14 = arith.constant 0.000000e+00 : f32
    %18 = vector.broadcast %cst_14 : f32 to vector<16x512xf32>
    %19 = arith.maximumf %17, %18 : vector<16x512xf32>
    %20 = vector.broadcast %4 : vector<16x1xf32> to vector<16x512xf32>
    %21 = arith.mulf %20, %19 : vector<16x512xf32>
    %cst_15 = arith.constant dense<0.000000e+00> : vector<512xf32>
    %22 = vector.multi_reduction <add>, %21, %cst_15 [0] : vector<16x512xf32> to vector<512xf32>
    %23 = vector.shape_cast %22 : vector<512xf32> to vector<1x512xf32>
    %24 = vector.broadcast %5 : vector<1x1xf32> to vector<1x512xf32>
    %25 = arith.addf %23, %24 : vector<1x512xf32>
    %26 = arith.negf %25 : vector<1x512xf32>
    %27 = math.exp %26 : vector<1x512xf32>
    %cst_16 = arith.constant 1.000000e+00 : f32
    %28 = vector.broadcast %cst_16 : f32 to vector<1x512xf32>
    %29 = arith.addf %28, %27 : vector<1x512xf32>
    %30 = arith.divf %28, %29 : vector<1x512xf32>
    %c0_17 = arith.constant 0 : index
    %31 = arith.index_cast %7 : i32 to index
    %32 = vector.load %arg8[%c0_17, %31] : memref<1x512xf32, #tpu.memory_space<vmem>>, vector<1x512xf32>
    tpu.vector_store %arg8[%c0_17, %31], %30 {strides = array<i32>} : memref<1x512xf32, #tpu.memory_space<vmem>>, vector<1x512xf32>,
    %c1_i32 = arith.constant 1 : i32
    return
  }
  func.func @transform_0(%arg0: i32) -> (i32, i32) {
    %c0_i32 = arith.constant 0 : i32
    %c0_i32_0 = arith.constant 0 : i32
    return %c0_i32, %arg0 : i32, i32
  }
  func.func @transform_1(%arg0: i32) -> (i32, i32) {
    %c0_i32 = arith.constant 0 : i32
    %c0_i32_0 = arith.constant 0 : i32
    %c0_i32_1 = arith.constant 0 : i32
    return %c0_i32, %c0_i32_0 : i32, i32
  }
  func.func @transform_2(%arg0: i32) -> (i32, i32) {
    %c0_i32 = arith.constant 0 : i32
    %c0_i32_0 = arith.constant 0 : i32
    %c0_i32_1 = arith.constant 0 : i32
    return %c0_i32, %c0_i32_0 : i32, i32
  }
  func.func @transform_3(%arg0: i32) -> (i32, i32) {
    %c0_i32 = arith.constant 0 : i32
    %c0_i32_0 = arith.constant 0 : i32
    %c0_i32_1 = arith.constant 0 : i32
    return %c0_i32, %c0_i32_0 : i32, i32
  }
  func.func @transform_4(%arg0: i32) -> (i32, i32) {
    %c0_i32 = arith.constant 0 : i32
    %c0_i32_0 = arith.constant 0 : i32
    %c0_i32_1 = arith.constant 0 : i32
    return %c0_i32, %c0_i32_0 : i32, i32
  }
  func.func @transform_5(%arg0: i32) -> (i32, i32) {
    %c0_i32 = arith.constant 0 : i32
    %c0_i32_0 = arith.constant 0 : i32
    %c0_i32_1 = arith.constant 0 : i32
    return %c0_i32, %c0_i32_0 : i32, i32
  }
  func.func @transform_6(%arg0: i32) -> (i32, i32) {
    %c0_i32 = arith.constant 0 : i32
    %c0_i32_0 = arith.constant 0 : i32
    %c0_i32_1 = arith.constant 0 : i32
    return %c0_i32, %c0_i32_0 : i32, i32
  }
  func.func @transform_7(%arg0: i32) -> (i32, i32) {
    %c0_i32 = arith.constant 0 : i32
    %c0_i32_0 = arith.constant 0 : i32
    return %c0_i32, %arg0 : i32, i32
  }
}

</mosaic_0001>

<llo_original>
// kernel: tpu_custom_call.1
$region0: #{tpu_custom_call.1}
  #allocation0 [shape = 'u32[]', space=smem, size = 0x4, offset = 0x4, fixed_abs, tag = 'smem constant byte address 0x4 - core index']
  #allocation1 [shape = 'u32[72,128]{1,0:T(1,128)}', space=vmem, size = 0x9000, scoped, tag = 'internal scratch']
  #allocation2 [shape = 'f32[1,1]{1,0:T(1,128)S(1)}', space=vmem, size = 0x200, scoped, tag = 'scoped memory for tpu_custom_call.1']
  %s0 = inlined_call_operand.vmem [shape: f32[3,512], index: 0, kind: input, shape index: {}]
  %s1 = inlined_call_operand.vmem [shape: f32[32,3], index: 1, kind: input, shape index: {}]
  %s2 = inlined_call_operand.vmem [shape: f32[32,1], index: 2, kind: input, shape index: {}]
  %s3 = inlined_call_operand.vmem [shape: f32[16,32], index: 3, kind: input, shape index: {}]
  %s4 = inlined_call_operand.vmem [shape: f32[16,1], index: 4, kind: input, shape index: {}]
  %s5 = inlined_call_operand.vmem [shape: f32[16,1], index: 5, kind: input, shape index: {}]
  %s6 = inlined_call_operand.<no memory space> [shape: f32[1,1], index: 6, kind: input, shape index: {}]
  %s7 = inlined_call_operand.hbm [shape: f32[1,512], index: 7, kind: output, shape index: {}]
  %s8 = sld [smem:[#allocation0]]
  $region38: #{tpu_custom_call.1} parent=0
    _
  %s10 = ssub.s32 1, %s8
  %s11 = scalar_select 0, %s10, %s8
  %v12 = vstv %s6
  %13 = vst [vmem:[#allocation2] sm:$0x1] %v12
  $region1: #{tpu_custom_call.1} parent=0
    #allocation3 [shape = 'u8[2048]{0}', space=vmem, size = 0x800, scoped, tag = 'output window, operand 0, single buffered']
    #allocation4 [shape = 's32[1]{0}', space=sflag, size = 0x4, scoped, tag = 'scoped memory for tpu_custom_call.1']
    %14 = vsyncpa [#allocation4], 0
    // Predicated region
    $region2: #{tpu_custom_call.1} parent=1 // pred_check
      _
    $region3: #{tpu_custom_call.1} parent=1 // pred_check_branch
      %16 = sbr.rel (0) target = $region5
    $region4: #{tpu_custom_call.1} parent=1 // pred_region
      _
    $region5: #{tpu_custom_call.1} parent=1 // pred_fallthru
      _
    // Predicated region
    $region6: #{tpu_custom_call.1} parent=1 // pred_check
      _
    $region7: #{tpu_custom_call.1} parent=1 // pred_check_branch
      %18 = sbr.rel (0) target = $region9
    $region8: #{tpu_custom_call.1} parent=1 // pred_region
      _
    $region9: #{tpu_custom_call.1} parent=1 // pred_fallthru
      _
    // Predicated region
    $region10: #{tpu_custom_call.1} parent=1 // pred_check
      _
    $region11: #{tpu_custom_call.1} parent=1 // pred_check_branch
      %20 = sbr.rel (0) target = $region13
    $region12: #{tpu_custom_call.1} parent=1 // pred_region
      _
    $region13: #{tpu_custom_call.1} parent=1 // pred_fallthru
      _
    // Predicated region
    $region14: #{tpu_custom_call.1} parent=1 // pred_check
      _
    $region15: #{tpu_custom_call.1} parent=1 // pred_check_branch
      %22 = sbr.rel (0) target = $region17
    $region16: #{tpu_custom_call.1} parent=1 // pred_region
      _
    $region17: #{tpu_custom_call.1} parent=1 // pred_fallthru
      _
    // Predicated region
    $region18: #{tpu_custom_call.1} parent=1 // pred_check
      _
    $region19: #{tpu_custom_call.1} parent=1 // pred_check_branch
      %24 = sbr.rel (0) target = $region21
    $region20: #{tpu_custom_call.1} parent=1 // pred_region
      _
    $region21: #{tpu_custom_call.1} parent=1 // pred_fallthru
      _
    // Predicated region
    $region22: #{tpu_custom_call.1} parent=1 // pred_check
      _
    $region23: #{tpu_custom_call.1} parent=1 // pred_check_branch
      %26 = sbr.rel (0) target = $region25
    $region24: #{tpu_custom_call.1} parent=1 // pred_region
      _
    $region25: #{tpu_custom_call.1} parent=1 // pred_fallthru
      _
    // Predicated region
    $region26: #{tpu_custom_call.1} parent=1 // pred_check
      _
    $region27: #{tpu_custom_call.1} parent=1 // pred_check_branch
      %28 = sbr.rel (0) target = $region29
    $region28: #{tpu_custom_call.1} parent=1 // pred_region
      _
    $region29: #{tpu_custom_call.1} parent=1 // pred_fallthru
      _
    %v29 = vld [vmem:[%s1] sm:$0xff]
    %v30 = vld [vmem:[%s1 + $0x8] sm:$0xff]
    %v31 = vld [vmem:[%s1 + $0x10] sm:$0xff]
    %v32 = vld [vmem:[%s1 + $0x18] sm:$0xff]
    %v33 = vld [vmem:[%s2] sm:$0xff]
    %v34 = vld [vmem:[%s2 + $0x8] sm:$0xff]
    %v35 = vld [vmem:[%s2 + $0x10] sm:$0xff]
    %v36 = vld [vmem:[%s2 + $0x18] sm:$0xff]
    %v37 = vld [vmem:[%s3] sm:$0xff]
    %v38 = vld [vmem:[%s3 + $0x8] sm:$0xff]
    %v39 = vld [vmem:[%s4] sm:$0xff]
    %v40 = vld [vmem:[%s4 + $0x8] sm:$0xff]
    %v41 = vld [vmem:[%s5] sm:$0xff]
    %v42 = vld [vmem:[%s5 + $0x8] sm:$0xff]
    %v43 = vld [vmem:[#allocation2] sm:$0x1]
    %v44 = vld [vmem:[%s0] sm:$0x77]
    %v45 = vld [vmem:[%s0 + $0x8] sm:$0x77]
    %47 = vset.pattern.permute.xlu0 0
    %48 = vperm.xlu0 %47, %v33
    %v49 = vpop.permute.xlu0 %48
    %52 = vset.pattern.permute.xlu0 0
    %53 = vperm.xlu0 %52, %v34
    %v54 = vpop.permute.xlu0 %53
    %57 = vset.pattern.permute.xlu0 0
    %58 = vperm.xlu0 %57, %v35
    %v59 = vpop.permute.xlu0 %58
    %62 = vset.pattern.permute.xlu0 0
    %63 = vperm.xlu0 %62, %v36
    %v64 = vpop.permute.xlu0 %63
    %68 = vst [vmem:[#allocation1] ss:$2 sm:$0xff] %v44
    %s69 = scalar_lea.vmem [#allocation1], 16
    %70 = vst [vmem:[%s69] ss:$2 sm:$0xff] %v45
    %v71 = vld.sshfl [vmem:[#allocation1] sm:$0xff pattern:$0x75316420]
    %v72 = vld.sshfl [vmem:[#allocation1 + $0x8] sm:$0xff pattern:$0x75316420]
    %v73 = vld.sshfl [vmem:[#allocation1 + $0x10] sm:$0xff pattern:$0x75316420]
    %v74 = vld.sshfl [vmem:[#allocation1 + $0x18] sm:$0xff pattern:$0x75316420]
    %vm75 = vcmask 23552
    %v77 = vsel %vm75, %v29, 0
    %v80 = vsel %vm75, %v30, 0
    %v83 = vsel %vm75, %v31, 0
    %v86 = vsel %vm75, %v32, 0
    %vm88 = vcmask 1042432
    %v89 = vsel %vm88, %v71, 0
    %v91 = vsel %vm88, %v72, 0
    %v93 = vsel %vm88, %v73, 0
    %v95 = vsel %vm88, %v74, 0
    %97 = vmatpush.msra.mxu0 0.0
    %98 = vmatpush.msra.mxu0 0.0
    %99 = vmatpush.msra.mxu0 0.0
    %100 = vmatpush.msra.mxu0 0.0
    %101 = vmatpush.msra.mxu0 0.0
    %102 = vmatpush.msra.mxu0 0.0
    %103 = vmatpush.msra.mxu0 0.0
    %104 = vmatpush.msra.mxu0 0.0
    %105 = vmatpush.msra.mxu0 0.0
    %106 = vmatpush.msra.mxu0 0.0
    %107 = vmatpush.msra.mxu0 0.0
    %108 = vmatpush.msra.mxu0 0.0
    %109 = vmatpush.msra.mxu0 0.0
    %110 = vmatpush.msra.mxu0 0.0
    %111 = vmatpush.msra.mxu0 0.0
    %112 = vmatpush.msra.mxu0 %v89
    %113 = vmatmul.f32.gmra.mxu0 %v77
    %v114 = vpop.f32.mrf.mxu0
    %v115 = vadd.f32 %v49, %v114
    %116 = vmatmul.f32.gmra.mxu0 %v80
    %v117 = vpop.f32.mrf.mxu0
    %v118 = vadd.f32 %v54, %v117
    %119 = vmatmul.f32.gmra.mxu0 %v83
    %v120 = vpop.f32.mrf.mxu0
    %v121 = vadd.f32 %v59, %v120
    %122 = vmatmul.f32.gmra.mxu0 %v86
    %v123 = vpop.f32.mrf.mxu0
    %v124 = vadd.f32 %v64, %v123
    %125 = vdwg.mxu0
    %126 = vmatpush.msra.mxu0 0.0
    %127 = vmatpush.msra.mxu0 0.0
    %128 = vmatpush.msra.mxu0 0.0
    %129 = vmatpush.msra.mxu0 0.0
    %130 = vmatpush.msra.mxu0 0.0
    %131 = vmatpush.msra.mxu0 0.0
    %132 = vmatpush.msra.mxu0 0.0
    %133 = vmatpush.msra.mxu0 0.0
    %134 = vmatpush.msra.mxu0 0.0
    %135 = vmatpush.msra.mxu0 0.0
    %136 = vmatpush.msra.mxu0 0.0
    %137 = vmatpush.msra.mxu0 0.0
    %138 = vmatpush.msra.mxu0 0.0
    %139 = vmatpush.msra.mxu0 0.0
    %140 = vmatpush.msra.mxu0 0.0
    %141 = vmatpush.msra.mxu0 %v91
    %142 = vmatmul.f32.gmra.mxu0 %v77
    %v143 = vpop.f32.mrf.mxu0
    %v144 = vadd.f32 %v49, %v143
    %145 = vmatmul.f32.gmra.mxu0 %v80
    %v146 = vpop.f32.mrf.mxu0
    %v147 = vadd.f32 %v54, %v146
    %148 = vmatmul.f32.gmra.mxu0 %v83
    %v149 = vpop.f32.mrf.mxu0
    %v150 = vadd.f32 %v59, %v149
    %151 = vmatmul.f32.gmra.mxu0 %v86
    %v152 = vpop.f32.mrf.mxu0
    %v153 = vadd.f32 %v64, %v152
    %154 = vdwg.mxu0
    %155 = vmatpush.msra.mxu0 0.0
    %156 = vmatpush.msra.mxu0 0.0
    %157 = vmatpush.msra.mxu0 0.0
    %158 = vmatpush.msra.mxu0 0.0
    %159 = vmatpush.msra.mxu0 0.0
    %160 = vmatpush.msra.mxu0 0.0
    %161 = vmatpush.msra.mxu0 0.0
    %162 = vmatpush.msra.mxu0 0.0
    %163 = vmatpush.msra.mxu0 0.0
    %164 = vmatpush.msra.mxu0 0.0
    %165 = vmatpush.msra.mxu0 0.0
    %166 = vmatpush.msra.mxu0 0.0
    %167 = vmatpush.msra.mxu0 0.0
    %168 = vmatpush.msra.mxu0 0.0
    %169 = vmatpush.msra.mxu0 0.0
    %170 = vmatpush.msra.mxu0 %v93
    %171 = vmatmul.f32.gmra.mxu0 %v77
    %v172 = vpop.f32.mrf.mxu0
    %v173 = vadd.f32 %v49, %v172
    %174 = vmatmul.f32.gmra.mxu0 %v80
    %v175 = vpop.f32.mrf.mxu0
    %v176 = vadd.f32 %v54, %v175
    %177 = vmatmul.f32.gmra.mxu0 %v83
    %v178 = vpop.f32.mrf.mxu0
    %v179 = vadd.f32 %v59, %v178
    %180 = vmatmul.f32.gmra.mxu0 %v86
    %v181 = vpop.f32.mrf.mxu0
    %v182 = vadd.f32 %v64, %v181
    %183 = vdwg.mxu0
    %184 = vmatpush.msra.mxu0 0.0
    %185 = vmatpush.msra.mxu0 0.0
    %186 = vmatpush.msra.mxu0 0.0
    %187 = vmatpush.msra.mxu0 0.0
    %188 = vmatpush.msra.mxu0 0.0
    %189 = vmatpush.msra.mxu0 0.0
    %190 = vmatpush.msra.mxu0 0.0
    %191 = vmatpush.msra.mxu0 0.0
    %192 = vmatpush.msra.mxu0 0.0
    %193 = vmatpush.msra.mxu0 0.0
    %194 = vmatpush.msra.mxu0 0.0
    %195 = vmatpush.msra.mxu0 0.0
    %196 = vmatpush.msra.mxu0 0.0
    %197 = vmatpush.msra.mxu0 0.0
    %198 = vmatpush.msra.mxu0 0.0
    %199 = vmatpush.msra.mxu0 %v95
    %200 = vmatmul.f32.gmra.mxu0 %v77
    %v201 = vpop.f32.mrf.mxu0
    %v202 = vadd.f32 %v49, %v201
    %203 = vmatmul.f32.gmra.mxu0 %v80
    %v204 = vpop.f32.mrf.mxu0
    %v205 = vadd.f32 %v54, %v204
    %206 = vmatmul.f32.gmra.mxu0 %v83
    %v207 = vpop.f32.mrf.mxu0
    %v208 = vadd.f32 %v59, %v207
    %209 = vmatmul.f32.gmra.mxu0 %v86
    %v210 = vpop.f32.mrf.mxu0
    %v211 = vadd.f32 %v64, %v210
    %212 = vdwg.mxu0
    %v213 = vmax.f32 %v115, 0.0
    %v214 = vmax.f32 %v144, 0.0
    %v215 = vmax.f32 %v173, 0.0
    %v216 = vmax.f32 %v202, 0.0
    %v217 = vmax.f32 %v118, 0.0
    %v218 = vmax.f32 %v147, 0.0
    %v219 = vmax.f32 %v176, 0.0
    %v220 = vmax.f32 %v205, 0.0
    %v221 = vmax.f32 %v121, 0.0
    %v222 = vmax.f32 %v150, 0.0
    %v223 = vmax.f32 %v179, 0.0
    %v224 = vmax.f32 %v208, 0.0
    %v225 = vmax.f32 %v124, 0.0
    %v226 = vmax.f32 %v153, 0.0
    %v227 = vmax.f32 %v182, 0.0
    %v228 = vmax.f32 %v211, 0.0
    %230 = vset.pattern.permute.xlu0 0
    %231 = vperm.xlu0 %230, %v39
    %v232 = vpop.permute.xlu0 %231
    %235 = vset.pattern.permute.xlu0 0
    %236 = vperm.xlu0 %235, %v40
    %v237 = vpop.permute.xlu0 %236
    %vm239 = vcmask 261120
    %v241 = vsel %vm239, %v37, 0
    %v244 = vsel %vm239, %v38, 0
    %246 = vmatpush.msra.mxu0 0.0
    %247 = vmatpush.msra.mxu0 0.0
    %248 = vmatpush.msra.mxu0 0.0
    %249 = vmatpush.msra.mxu0 0.0
    %250 = vmatpush.msra.mxu0 0.0
    %251 = vmatpush.msra.mxu0 0.0
    %252 = vmatpush.msra.mxu0 0.0
    %253 = vmatpush.msra.mxu0 0.0
    %254 = vmatpush.msra.mxu0 0.0
    %255 = vmatpush.msra.mxu0 0.0
    %256 = vmatpush.msra.mxu0 0.0
    %257 = vmatpush.msra.mxu0 0.0
    %258 = vmatpush.msra.mxu0 %v225
    %259 = vmatpush.msra.mxu0 %v221
    %260 = vmatpush.msra.mxu0 %v217
    %261 = vmatpush.msra.mxu0 %v213
    %262 = vmatmul.f32.gmra.mxu0 %v241
    %v263 = vpop.f32.mrf.mxu0
    %v264 = vadd.f32 %v232, %v263
    %265 = vmatmul.f32.gmra.mxu0 %v244
    %v266 = vpop.f32.mrf.mxu0
    %v267 = vadd.f32 %v237, %v266
    %268 = vdwg.mxu0
    %269 = vmatpush.msra.mxu0 0.0
    %270 = vmatpush.msra.mxu0 0.0
    %271 = vmatpush.msra.mxu0 0.0
    %272 = vmatpush.msra.mxu0 0.0
    %273 = vmatpush.msra.mxu0 0.0
    %274 = vmatpush.msra.mxu0 0.0
    %275 = vmatpush.msra.mxu0 0.0
    %276 = vmatpush.msra.mxu0 0.0
    %277 = vmatpush.msra.mxu0 0.0
    %278 = vmatpush.msra.mxu0 0.0
    %279 = vmatpush.msra.mxu0 0.0
    %280 = vmatpush.msra.mxu0 0.0
    %281 = vmatpush.msra.mxu0 %v226
    %282 = vmatpush.msra.mxu0 %v222
    %283 = vmatpush.msra.mxu0 %v218
    %284 = vmatpush.msra.mxu0 %v214
    %285 = vmatmul.f32.gmra.mxu0 %v241
    %v286 = vpop.f32.mrf.mxu0
    %v287 = vadd.f32 %v232, %v286
    %288 = vmatmul.f32.gmra.mxu0 %v244
    %v289 = vpop.f32.mrf.mxu0
    %v290 = vadd.f32 %v237, %v289
    %291 = vdwg.mxu0
    %292 = vmatpush.msra.mxu0 0.0
    %293 = vmatpush.msra.mxu0 0.0
    %294 = vmatpush.msra.mxu0 0.0
    %295 = vmatpush.msra.mxu0 0.0
    %296 = vmatpush.msra.mxu0 0.0
    %297 = vmatpush.msra.mxu0 0.0
    %298 = vmatpush.msra.mxu0 0.0
    %299 = vmatpush.msra.mxu0 0.0
    %300 = vmatpush.msra.mxu0 0.0
    %301 = vmatpush.msra.mxu0 0.0
    %302 = vmatpush.msra.mxu0 0.0
    %303 = vmatpush.msra.mxu0 0.0
    %304 = vmatpush.msra.mxu0 %v227
    %305 = vmatpush.msra.mxu0 %v223
    %306 = vmatpush.msra.mxu0 %v219
    %307 = vmatpush.msra.mxu0 %v215
    %308 = vmatmul.f32.gmra.mxu0 %v241
    %v309 = vpop.f32.mrf.mxu0
    %v310 = vadd.f32 %v232, %v309
    %311 = vmatmul.f32.gmra.mxu0 %v244
    %v312 = vpop.f32.mrf.mxu0
    %v313 = vadd.f32 %v237, %v312
    %314 = vdwg.mxu0
    %315 = vmatpush.msra.mxu0 0.0
    %316 = vmatpush.msra.mxu0 0.0
    %317 = vmatpush.msra.mxu0 0.0
    %318 = vmatpush.msra.mxu0 0.0
    %319 = vmatpush.msra.mxu0 0.0
    %320 = vmatpush.msra.mxu0 0.0
    %321 = vmatpush.msra.mxu0 0.0
    %322 = vmatpush.msra.mxu0 0.0
    %323 = vmatpush.msra.mxu0 0.0
    %324 = vmatpush.msra.mxu0 0.0
    %325 = vmatpush.msra.mxu0 0.0
    %326 = vmatpush.msra.mxu0 0.0
    %327 = vmatpush.msra.mxu0 %v228
    %328 = vmatpush.msra.mxu0 %v224
    %329 = vmatpush.msra.mxu0 %v220
    %330 = vmatpush.msra.mxu0 %v216
    %331 = vmatmul.f32.gmra.mxu0 %v241
    %v332 = vpop.f32.mrf.mxu0
    %v333 = vadd.f32 %v232, %v332
    %334 = vmatmul.f32.gmra.mxu0 %v244
    %v335 = vpop.f32.mrf.mxu0
    %v336 = vadd.f32 %v237, %v335
    %337 = vdwg.mxu0
    %v338 = vmax.f32 %v264, 0.0
    %v339 = vmax.f32 %v287, 0.0
    %v340 = vmax.f32 %v310, 0.0
    %v341 = vmax.f32 %v333, 0.0
    %v342 = vmax.f32 %v267, 0.0
    %v343 = vmax.f32 %v290, 0.0
    %v344 = vmax.f32 %v313, 0.0
    %v345 = vmax.f32 %v336, 0.0
    %347 = vset.pattern.permute.xlu0 0
    %348 = vperm.xlu0 %347, %v41
    %v349 = vpop.permute.xlu0 %348
    %352 = vset.pattern.permute.xlu0 0
    %353 = vperm.xlu0 %352, %v42
    %v354 = vpop.permute.xlu0 %353
    %v356 = vmul.f32 %v349, %v338
    %v357 = vmul.f32 %v349, %v339
    %v358 = vmul.f32 %v349, %v340
    %v359 = vmul.f32 %v349, %v341
    %v360 = vmul.f32 %v354, %v342
    %v361 = vmul.f32 %v354, %v343
    %v362 = vmul.f32 %v354, %v344
    %v363 = vmul.f32 %v354, %v345
    %v364 = vadd.f32 %v356, %v360
    %v365 = vrot.slane %v364, 4
    %v366 = vadd.f32 %v364, %v365
    %v367 = vrot.slane %v366, 2
    %v368 = vadd.f32 %v366, %v367
    %v369 = vrot.slane %v368, 1
    %v370 = vadd.f32 %v368, %v369
    %v371 = vadd.f32 %v357, %v361
    %v372 = vrot.slane %v371, 4
    %v373 = vadd.f32 %v371, %v372
    %v374 = vrot.slane %v373, 2
    %v375 = vadd.f32 %v373, %v374
    %v376 = vrot.slane %v375, 1
    %v377 = vadd.f32 %v375, %v376
    %v378 = vadd.f32 %v358, %v362
    %v379 = vrot.slane %v378, 4
    %v380 = vadd.f32 %v378, %v379
    %v381 = vrot.slane %v380, 2
    %v382 = vadd.f32 %v380, %v381
    %v383 = vrot.slane %v382, 1
    %v384 = vadd.f32 %v382, %v383
    %v385 = vadd.f32 %v359, %v363
    %v386 = vrot.slane %v385, 4
    %v387 = vadd.f32 %v385, %v386
    %v388 = vrot.slane %v387, 2
    %v389 = vadd.f32 %v387, %v388
    %v390 = vrot.slane %v389, 1
    %v391 = vadd.f32 %v389, %v390
    %393 = vset.pattern.permute.xlu0 0
    %394 = vperm.xlu0 %393, %v43
    %v395 = vpop.permute.xlu0 %394
    %v397 = vperm.slane %v395, 0
    %v398 = vadd.f32 %v370, %v397
    %v399 = vadd.f32 %v377, %v397
    %v400 = vadd.f32 %v384, %v397
    %v401 = vadd.f32 %v391, %v397
    %v402 = vxor.u32 %v398, 2147483648
    %v403 = vxor.u32 %v399, 2147483648
    %v404 = vxor.u32 %v400, 2147483648
    %v405 = vxor.u32 %v401, 2147483648
    %v406 = vmul.f32 %v402, 1.442695
    %v407 = vpow.pop %v406
    %v408 = vmul.f32 %v403, 1.442695
    %v409 = vpow.pop %v408
    %v410 = vmul.f32 %v404, 1.442695
    %v411 = vpow.pop %v410
    %v412 = vmul.f32 %v405, 1.442695
    %v413 = vpow.pop %v412
    %v414 = vadd.f32 %v407, 1.0
    %v415 = vadd.f32 %v409, 1.0
    %v416 = vadd.f32 %v411, 1.0
    %v417 = vadd.f32 %v413, 1.0
    %v418 = vrcp.pop %v414
    %v419 = vmul.f32 %v414, %v418
    %v420 = vsub.f32 1.0, %v419
    %v421 = vmul.f32 %v418, %v420
    %v422 = vadd.f32 %v418, %v421
    %vm423 = vweird.f32 %v414
    %vm424 = vweird.f32 %v418
    %vm425 = vmor %vm423, %vm424
    %v426 = vsel %vm425, %v418, %v422
    %v427 = vand.u32 2147483647, %v414
    %vm428 = vcmp.eq.f32.partialorder %v427, 8.507059e+37
    %v429 = vand.u32 %v414, 2147483648
    %v430 = vor.u32 1.1754944e-38, %v429
    %v431 = vsel %vm428, %v430, %v426
    %v432 = vmul.f32 1.0, %v431
    %v433 = vrcp.pop %v415
    %v434 = vmul.f32 %v415, %v433
    %v435 = vsub.f32 1.0, %v434
    %v436 = vmul.f32 %v433, %v435
    %v437 = vadd.f32 %v433, %v436
    %vm438 = vweird.f32 %v415
    %vm439 = vweird.f32 %v433
    %vm440 = vmor %vm438, %vm439
    %v441 = vsel %vm440, %v433, %v437
    %v442 = vand.u32 2147483647, %v415
    %vm443 = vcmp.eq.f32.partialorder %v442, 8.507059e+37
    %v444 = vand.u32 %v415, 2147483648
    %v445 = vor.u32 1.1754944e-38, %v444
    %v446 = vsel %vm443, %v445, %v441
    %v447 = vmul.f32 1.0, %v446
    %v448 = vrcp.pop %v416
    %v449 = vmul.f32 %v416, %v448
    %v450 = vsub.f32 1.0, %v449
    %v451 = vmul.f32 %v448, %v450
    %v452 = vadd.f32 %v448, %v451
    %vm453 = vweird.f32 %v416
    %vm454 = vweird.f32 %v448
    %vm455 = vmor %vm453, %vm454
    %v456 = vsel %vm455, %v448, %v452
    %v457 = vand.u32 2147483647, %v416
    %vm458 = vcmp.eq.f32.partialorder %v457, 8.507059e+37
    %v459 = vand.u32 %v416, 2147483648
    %v460 = vor.u32 1.1754944e-38, %v459
    %v461 = vsel %vm458, %v460, %v456
    %v462 = vmul.f32 1.0, %v461
    %v463 = vrcp.pop %v417
    %v464 = vmul.f32 %v417, %v463
    %v465 = vsub.f32 1.0, %v464
    %v466 = vmul.f32 %v463, %v465
    %v467 = vadd.f32 %v463, %v466
    %vm468 = vweird.f32 %v417
    %vm469 = vweird.f32 %v463
    %vm470 = vmor %vm468, %vm469
    %v471 = vsel %vm470, %v463, %v467
    %v472 = vand.u32 2147483647, %v417
    %vm473 = vcmp.eq.f32.partialorder %v472, 8.507059e+37
    %v474 = vand.u32 %v417, 2147483648
    %v475 = vor.u32 1.1754944e-38, %v474
    %v476 = vsel %vm473, %v475, %v471
    %v477 = vmul.f32 1.0, %v476
    %v482 = vrot.slane %v447, 7
    %v483 = vrot.slane %v462, 6
    %v484 = vrot.slane %v477, 5
    %vm485 = vcmask 1040384
    %v486 = vsel %vm485, %v432, %v482
    %vm487 = vcmask 1042434
    %v488 = vsel %vm487, %v483, %v484
    %vm489 = vcmask 1041408
    %v490 = vsel %vm489, %v486, %v488
    %v492 = vlaneseq
    %vm493 = vcmp.ge.s32.totalorder %v492, 0
    %vm494 = vcmp.lt.s32.totalorder %v492, 512
    %vm495 = vmand %vm493, %vm494
    %496 = vst.msk [vmem:[#allocation3] sm:$0xf] %vm495, %v490
    // Predicated region
    $region30: #{tpu_custom_call.1} parent=1 // pred_check
      _
    $region31: #{tpu_custom_call.1} parent=1 // pred_check_branch
      %498 = sbr.rel (0) target = $region33
    $region32: #{tpu_custom_call.1} parent=1 // pred_region
      %500 = vsyncadd [#allocation4], 0
      %s502 = sshll.u32 [#allocation3], 4
      %s503 = int_to_ptr.vmem [resolvable:$true] %s502
      %s504 = sshll.u32 %s7, 4
      %s505 = int_to_ptr.hbm [resolvable:$true] %s504
      %507 = dma.vmem_to_hbm [thread:$0]  %s503, 64, %s505, [#allocation4]
    $region33: #{tpu_custom_call.1} parent=1 // pred_fallthru
      _
    // Predicated region
    $region34: #{tpu_custom_call.1} parent=1 // pred_check
      _
    $region35: #{tpu_custom_call.1} parent=1 // pred_check_branch
      %509 = sbr.rel (0) target = $region37
    $region36: #{tpu_custom_call.1} parent=1 // pred_region
      %511 = dma.done [#allocation4], 64
    $region37: #{tpu_custom_call.1} parent=1 // pred_fallthru
      _
    %512 = vsyncpa [#allocation4], 1

</llo_original>
